<compile_context>
chip_gen: v5e
topology: v5e:2x2
jax: 0.10.0
libtpu: 0.0.40
codegen_flags: <defaults>
</compile_context>

<pallas_src>
import jax
import jax.numpy as jnp
from jax.experimental import pallas as pl
from jax.experimental.pallas import tpu as pltpu


# ----------------------------------------------------------------------------- helpers

def _physical_vmem_bytes():
    """Per-core VMEM capacity; conservative 64 MiB (v7x-sized) fallback."""
    try:
        cap = int(pltpu.get_tpu_info().vmem_capacity_bytes)
        if cap > 0:
            return cap
    except Exception:
        pass
    return 64 << 20


def _vmem_plan(override_budget=None):
    """(tile budget, vmem_limit_bytes) sized for the current TPU generation."""
    cap = _physical_vmem_bytes()
    if override_budget is not None:
        budget = int(override_budget)
    else:
        # ~40 MiB on v5e/v6e (128 MiB physical VMEM), ~20 MiB on v7x (64 MiB).
        budget = max(8 << 20, min(40 << 20, (cap * 5) // 16))
    # Raise the scoped limit above the 16/32 MiB defaults but stay below physical.
    vmem_limit = min((cap * 3) // 4, budget + (16 << 20))
    vmem_limit = max(vmem_limit, budget + (1 << 20))
    return budget, vmem_limit


def _pick_tiles(B, S, E, itemsize, budget_bytes, min_grid=4):
    """Choose (TB, TS) batch / sequence tile sizes.

    Blocks are (TB, TS, E); TS must be a multiple of 8 or the full S (the
    (8,128) rule applies to the last two block dims; E is the full array dim so
    it is always legal).  Prefer configurations with >= min_grid grid steps
    (pipelining + megacore sharding), then the largest tile that fits the
    double-buffering budget.
    """
    tb_cands = [d for d in range(B, 0, -1) if B % d == 0]
    ts_cands = [d for d in range(S, 0, -1) if S % d == 0 and (d == S or d % 8 == 0)]

    def step_bytes(tb, ts):
        # double-buffered input + output embedding blocks + the tiny w block
        return 4 * tb * ts * E * itemsize + 2 * tb * ts * itemsize

    best = None
    for tb in tb_cands:
        for ts in ts_cands:
            if step_bytes(tb, ts) > budget_bytes:
                continue
            g = (B // tb) * (S // ts)
            key = ((g >= min_grid), tb * ts, -g)
            if best is None or key > best[0]:
                best = (key, tb, ts)
    if best is None:
        return tb_cands[-1], ts_cands[-1]  # smallest legal tile
    return best[1], best[2]


# ----------------------------------------------------------------------------- kernel

def _scale_kernel(w_ref, embs_ref, out_ref):
    # Pure memory-bound per-(b, s) scaling of the embedding tile.
    # w_ref: (TB, TS, 1), embs_ref/out_ref: (TB, TS, E); lane-broadcast multiply.
    out_ref[...] = (embs_ref[...] * w_ref[...]).astype(out_ref.dtype)


# ----------------------------------------------------------------------------- wrapper

def time_causal_regulator_forward(concepts, concept_embs,
                                  time_causal_matrix, concept_causal_matrix,
                                  *, rng_key=None, seed=0,
                                  temperature=0.1, l1_lambda=0.001,
                                  sample_type="bernoulli",
                                  training=True, testing_sample=False,
                                  vmem_budget_override=None):
    """JAX/Pallas equivalent of TimeCausalRegulator.forward.

    Returns (out_concept_embs, step_norm_loss); loss is None when not training."""
    if (not training) and (not testing_sample):
        return concept_embs, None

    B, S, E = concept_embs.shape
    max_len = int(time_causal_matrix.shape[0])
    C = int(concept_causal_matrix.shape[0])
    if S > max_len:
        raise ValueError(f"seq_len ({S}) must be <= max_len ({max_len}).")

    f32 = jnp.float32
    if rng_key is None:
        rng_key = jax.random.PRNGKey(seed)

    # ---- O(parameters) + O(B*S) side work: plain XLA, done once --------------
    time_w = time_causal_matrix[:S].astype(f32) / temperature          # (S,)
    conc_w = concept_causal_matrix.astype(f32) / temperature           # (C,)
    causal = time_w[:, None] * conc_w[None, :]                         # (S, C)

    # TODO(synk): jax.random replaces torch's RNG stream — distributionally, not
    # bitwise, equivalent to torch.bernoulli / torch.rand.
    u = jax.random.uniform(rng_key, (S, C), dtype=f32)
    if sample_type == "bernoulli":
        weights = (u < jax.nn.sigmoid(causal)).astype(f32)             # (S, C)
    elif sample_type == "gumbel":
        u_c = jnp.clip(u, 1e-20, 1.0 - 1e-7)
        # matches the reference: y = logits + log(-log(noise)); weights = sigmoid(y)
        weights = jax.nn.sigmoid(causal + jnp.log(-jnp.log(u_c)))      # (S, C)
    else:
        raise ValueError("Invalid sample_type. Choose 'gumbel' or 'bernoulli'.")

    # Gather w[b, s] = weights[s, concepts[b, s]].
    # TODO(synk): out-of-range concept IDs are clamped by JAX indexing instead of
    # raising like torch indexing would.
    concepts_i32 = concepts.astype(jnp.int32)
    w = weights[jnp.arange(S, dtype=jnp.int32)[None, :], concepts_i32]  # (B, S)
    w = w.astype(concept_embs.dtype)[:, :, None]                        # (B, S, 1)

    # ---- O(B*S*E) scaling: the Pallas kernel (memory-bound) ------------------
    itemsize = jnp.dtype(concept_embs.dtype).itemsize
    budget, vmem_limit = _vmem_plan(vmem_budget_override)
    TB, TS = _pick_tiles(B, S, E, itemsize, budget)
    grid = (B // TB, S // TS)

    cost = pl.CostEstimate(
        flops=int(B * S * E),
        transcendentals=0,
        bytes_accessed=int(2 * B * S * E * itemsize + B * S * itemsize),
    )

    out = pl.pallas_call(
        _scale_kernel,
        grid_spec=pltpu.PrefetchScalarGridSpec(
            num_scalar_prefetch=0,
            grid=grid,
            in_specs=[
                pl.BlockSpec((TB, TS, 1), lambda b, s: (b, s, 0)),   # per-(b,s) weight
                pl.BlockSpec((TB, TS, E), lambda b, s: (b, s, 0)),   # embeddings tile
            ],
            out_specs=pl.BlockSpec((TB, TS, E), lambda b, s: (b, s, 0)),
        ),
        out_shape=jax.ShapeDtypeStruct((B, S, E), concept_embs.dtype),
        compiler_params=pltpu.CompilerParams(
            dimension_semantics=("parallel", "parallel"),   # v7x: shard over 2 TCs
            vmem_limit_bytes=int(vmem_limit)),
        cost_estimate=cost,
    )(w, concept_embs)

    step_norm_loss = None
    if training:
        # ||outer(time/T, conc/T)||_F == ||time/T||_2 * ||conc/T||_2 (rank-1, exact).
        tw = time_causal_matrix.astype(f32) / temperature
        cw = concept_causal_matrix.astype(f32) / temperature
        step_norm_loss = l1_lambda * jnp.sqrt(jnp.sum(tw * tw) * jnp.sum(cw * cw))

    return out, step_norm_loss


# ----------------------------------------------------------------------------- demo / self-test

if __name__ == "__main__":
    B, S, E = 2, 8, 32
    max_len, concept_num = 16, 16
    temperature, l1_lambda = 0.1, 0.001

    key = jax.random.PRNGKey(0)
    k_concepts, k_embs, k_u = jax.random.split(key, 3)
    concepts = jax.random.randint(k_concepts, (B, S), 0, concept_num, dtype=jnp.int32)
    concept_embs = jax.random.normal(k_embs, (B, S, E), dtype=jnp.float32)

    # nn.init.constant_(..., 0.1)
    time_causal_matrix = jnp.full((max_len,), 0.1, dtype=jnp.float32)
    concept_causal_matrix = jnp.full((concept_num,), 0.1, dtype=jnp.float32)

    out, loss = time_causal_regulator_forward(
        concepts, concept_embs, time_causal_matrix, concept_causal_matrix,
        rng_key=k_u, temperature=temperature, l1_lambda=l1_lambda,
        sample_type="bernoulli", training=True)
    jax.block_until_ready(out)
    jax.block_until_ready(loss)

    assert out.shape == concept_embs.shape and out.dtype == concept_embs.dtype
    assert loss.shape == () and bool(jnp.isfinite(loss))

    # Pure-JAX reference using the same uniforms.
    u = jax.random.uniform(k_u, (S, concept_num), dtype=jnp.float32)
    causal = jnp.outer(time_causal_matrix[:S] / temperature,
                       concept_causal_matrix / temperature)
    mask = (u < jax.nn.sigmoid(causal)).astype(jnp.float32)            # (S, C)
    w_ref = mask[jnp.arange(S)[None, :], concepts]                     # (B, S)
    out_ref = concept_embs * w_ref[:, :, None]
    assert bool(jnp.allclose(out, out_ref, atol=1e-5, rtol=1e-5))
    loss_ref = l1_lambda * jnp.linalg.norm(
        jnp.outer(time_causal_matrix / temperature,
                  concept_causal_matrix / temperature))
    assert bool(jnp.allclose(loss, loss_ref, atol=1e-6, rtol=1e-5))

    # Gumbel path.
    out_g, _ = time_causal_regulator_forward(
        concepts, concept_embs, time_causal_matrix, concept_causal_matrix,
        rng_key=k_u, temperature=temperature, l1_lambda=l1_lambda,
        sample_type="gumbel", training=True)
    jax.block_until_ready(out_g)
    u_c = jnp.clip(u, 1e-20, 1.0 - 1e-7)
    wg = jax.nn.sigmoid(causal + jnp.log(-jnp.log(u_c)))
    wg_ref = wg[jnp.arange(S)[None, :], concepts]
    assert bool(jnp.allclose(out_g, concept_embs * wg_ref[:, :, None],
                             atol=1e-5, rtol=1e-5))

    # Multi-step grid: a tiny VMEM budget forces tiling over batch and sequence.
    B2, S2, E2 = 4, 32, 128
    k_c2, k_e2, k_u2 = jax.random.split(jax.random.PRNGKey(1), 3)
    concepts2 = jax.random.randint(k_c2, (B2, S2), 0, concept_num, dtype=jnp.int32)
    embs2 = jax.random.normal(k_e2, (B2, S2, E2), dtype=jnp.float32)
    time2 = jnp.full((64,), 0.1, dtype=jnp.float32)
    out2, _ = time_causal_regulator_forward(
        concepts2, embs2, time2, concept_causal_matrix,
        rng_key=k_u2, temperature=temperature, l1_lambda=l1_lambda,
        sample_type="bernoulli", training=True,
        vmem_budget_override=64 << 10)
    jax.block_until_ready(out2)
    u2 = jax.random.uniform(k_u2, (S2, concept_num), dtype=jnp.float32)
    causal2 = jnp.outer(time2[:S2] / temperature,
                        concept_causal_matrix / temperature)
    mask2 = (u2 < jax.nn.sigmoid(causal2)).astype(jnp.float32)
    w2_ref = mask2[jnp.arange(S2)[None, :], concepts2]
    assert bool(jnp.allclose(out2, embs2 * w2_ref[:, :, None], atol=1e-5, rtol=1e-5))

    # Eval mode (training=False, testing_sample=False) passes embeddings through.
    out_eval, loss_eval = time_causal_regulator_forward(
        concepts, concept_embs, time_causal_matrix, concept_causal_matrix,
        training=False)
    assert loss_eval is None and bool(jnp.all(out_eval == concept_embs))

    print("KERNEL_OK")
</pallas_src>

<mosaic_0001>
module attributes {stable_mosaic.version = 11 : i64} {
  func.func @_scale_kernel(%arg0: i32, %arg1: i32, %arg2: memref<2x8x1xf32, #tpu.memory_space<vmem>>, %arg3: memref<2x8x32xf32, #tpu.memory_space<vmem>>, %arg4: memref<2x8x32xf32, #tpu.memory_space<vmem>>) attributes {dimension_semantics = [#tpu.dimension_semantics<parallel>, #tpu.dimension_semantics<parallel>], iteration_bounds = array<i64: 1, 1>, scalar_prefetch = 0 : i64, scratch_operands = 0 : i64, tpu.core_type = #tpu.core_type<tc>, window_params = [{transform_indices = @transform_0, window_bounds = array<i64: 2, 8, 1>}, {transform_indices = @transform_1, window_bounds = array<i64: 2, 8, 32>}, {transform_indices = @transform_2, window_bounds = array<i64: 2, 8, 32>}]} {
    %c0 = arith.constant 0 : index
    %c0_0 = arith.constant 0 : index
    %c0_1 = arith.constant 0 : index
    %0 = vector.load %arg3[%c0, %c0_0, %c0_1] : memref<2x8x32xf32, #tpu.memory_space<vmem>>, vector<2x8x32xf32>
    %c0_2 = arith.constant 0 : index
    %c0_3 = arith.constant 0 : index
    %c0_4 = arith.constant 0 : index
    %1 = vector.load %arg2[%c0_2, %c0_3, %c0_4] : memref<2x8x1xf32, #tpu.memory_space<vmem>>, vector<2x8x1xf32>
    %2 = vector.broadcast %1 : vector<2x8x1xf32> to vector<2x8x32xf32>
    %3 = arith.mulf %0, %2 : vector<2x8x32xf32>
    %c0_5 = arith.constant 0 : index
    %c0_6 = arith.constant 0 : index
    %c0_7 = arith.constant 0 : index
    %4 = vector.load %arg4[%c0_5, %c0_6, %c0_7] : memref<2x8x32xf32, #tpu.memory_space<vmem>>, vector<2x8x32xf32>
    tpu.vector_store %arg4[%c0_5, %c0_6, %c0_7], %3 {strides = array<i32>} : memref<2x8x32xf32, #tpu.memory_space<vmem>>, vector<2x8x32xf32>,
    return
  }
  func.func @transform_0(%arg0: i32, %arg1: i32) -> (i32, i32, i32) {
    %c0_i32 = arith.constant 0 : i32
    %c0_i32_0 = arith.constant 0 : i32
    return %arg0, %arg1, %c0_i32 : i32, i32, i32
  }
  func.func @transform_1(%arg0: i32, %arg1: i32) -> (i32, i32, i32) {
    %c0_i32 = arith.constant 0 : i32
    %c0_i32_0 = arith.constant 0 : i32
    return %arg0, %arg1, %c0_i32 : i32, i32, i32
  }
  func.func @transform_2(%arg0: i32, %arg1: i32) -> (i32, i32, i32) {
    %c0_i32 = arith.constant 0 : i32
    %c0_i32_0 = arith.constant 0 : i32
    return %arg0, %arg1, %c0_i32 : i32, i32, i32
  }
}

</mosaic_0001>

<llo_original>
// kernel: tpu_custom_call.1
$region0: #{tpu_custom_call.1}
  #allocation0 [shape = 'u32[]', space=smem, size = 0x4, offset = 0x4, fixed_abs, tag = 'smem constant byte address 0x4 - core index']
  #allocation1 [shape = 'u32[72,128]{1,0:T(1,128)}', space=vmem, size = 0x9000, scoped, tag = 'internal scratch']
  %s0 = inlined_call_operand.vmem [shape: f32[2,8,1], index: 0, kind: input, shape index: {}]
  %s1 = inlined_call_operand.vmem [shape: f32[2,8,32], index: 1, kind: input, shape index: {}]
  %s2 = inlined_call_operand.hbm [shape: f32[2,8,32], index: 2, kind: output, shape index: {}]
  %s3 = sld [smem:[#allocation0]]
  $region18: #{tpu_custom_call.1} parent=0
    _
  %s5 = ssub.s32 1, %s3
  %s6 = scalar_select 0, %s5, %s3
  $region1: #{tpu_custom_call.1} parent=0
    #allocation2 [shape = 'u8[8192]{0}', space=vmem, size = 0x2000, scoped, tag = 'output window, operand 0, single buffered']
    #allocation3 [shape = 's32[1]{0}', space=sflag, size = 0x4, scoped, tag = 'scoped memory for tpu_custom_call.1']
    %7 = vsyncpa [#allocation3], 0
    // Predicated region
    $region2: #{tpu_custom_call.1} parent=1 // pred_check
      _
    $region3: #{tpu_custom_call.1} parent=1 // pred_check_branch
      %9 = sbr.rel (0) target = $region5
    $region4: #{tpu_custom_call.1} parent=1 // pred_region
      _
    $region5: #{tpu_custom_call.1} parent=1 // pred_fallthru
      _
    // Predicated region
    $region6: #{tpu_custom_call.1} parent=1 // pred_check
      _
    $region7: #{tpu_custom_call.1} parent=1 // pred_check_branch
      %11 = sbr.rel (0) target = $region9
    $region8: #{tpu_custom_call.1} parent=1 // pred_region
      _
    $region9: #{tpu_custom_call.1} parent=1 // pred_fallthru
      _
    %v12 = vld [vmem:[%s1] sm:$0xff]
    %v13 = vld [vmem:[%s1 + $0x8] sm:$0xff]
    %v14 = vld [vmem:[%s0] sm:$0xff]
    %v15 = vld [vmem:[%s0 + $0x8] sm:$0xff]
    %17 = vset.pattern.permute.xlu0 0
    %18 = vperm.xlu0 %17, %v14
    %v19 = vpop.permute.xlu0 %18
    %22 = vset.pattern.permute.xlu0 0
    %23 = vperm.xlu0 %22, %v15
    %v24 = vpop.permute.xlu0 %23
    %v26 = vmul.f32 %v12, %v19
    %v27 = vmul.f32 %v13, %v24
    %vm28 = vcmask 261120
    %29 = vst.msk [vmem:[#allocation2] sm:$0xff] %vm28, %v26
    %30 = vst.msk [vmem:[#allocation2 + $0x8] sm:$0xff] %vm28, %v27
    // Predicated region
    $region10: #{tpu_custom_call.1} parent=1 // pred_check
      _
    $region11: #{tpu_custom_call.1} parent=1 // pred_check_branch
      %32 = sbr.rel (0) target = $region13
    $region12: #{tpu_custom_call.1} parent=1 // pred_region
      %34 = vsyncadd [#allocation3], 0
      %s35 = sshll.u32 [#allocation2], 4
      %s36 = int_to_ptr.vmem [resolvable:$true] %s35
      %s37 = sshll.u32 %s2, 4
      %s38 = int_to_ptr.hbm [resolvable:$true] %s37
      %43 = dma.vmem_to_hbm [thread:$0]  %s36, 256, %s38, [#allocation3], 128, 128, 8
    $region13: #{tpu_custom_call.1} parent=1 // pred_fallthru
      _
    // Predicated region
    $region14: #{tpu_custom_call.1} parent=1 // pred_check
      _
    $region15: #{tpu_custom_call.1} parent=1 // pred_check_branch
      %45 = sbr.rel (0) target = $region17
    $region16: #{tpu_custom_call.1} parent=1 // pred_region
      %47 = dma.done [#allocation3], 256
    $region17: #{tpu_custom_call.1} parent=1 // pred_fallthru
      _
    %48 = vsyncpa [#allocation3], 1

</llo_original>
